<compile_context>
chip_gen: v7x
topology: tpu7x:2x2x1
jax: 0.10.0
libtpu: 0.0.40
codegen_flags: <defaults>
</compile_context>

<pallas_src>
import functools

import jax
import jax.numpy as jnp
from jax.experimental import pallas as pl
from jax.experimental.pallas import tpu as pltpu


_HALO = 128  # one 128-lane block of halo per side (k=3 conv needs 1 column)


def _dense_layer_kernel(xl_ref, x_ref, xr_ref, w1_ref, s1_ref, b1_ref,
                        w2_ref, s2_ref, b2_ref, o_ref, *,
                        true_len, tile_l, halo):
    j = pl.program_id(1)

    # Extended tile along the lane (L) axis: [left halo | tile | right halo].
    x_ext = jnp.concatenate([xl_ref[0], x_ref[0], xr_ref[0]], axis=-1)  # (C_in, T+2h) bf16

    # BN1 (folded) + ReLU1 in f32 (bf16 * f32 promotes to f32).
    y1 = jnp.maximum(x_ext * s1_ref[...] + b1_ref[...], 0.0)

    # conv1: 1x1 conv == channel matmul on the MXU: (C_bn, C_in) @ (C_in, T+2h).
    bott = jnp.dot(w1_ref[...], y1.astype(jnp.bfloat16),
                   preferred_element_type=jnp.float32)

    # BN2 (folded) + ReLU2.
    y2 = jnp.maximum(bott * s2_ref[...] + b2_ref[...], 0.0)

    # Zero columns outside the true sequence: implements conv2's zero padding
    # and neutralizes the clamped edge halos / right-side L padding.
    pos = j * tile_l - halo + jax.lax.broadcasted_iota(jnp.int32, y2.shape, 1)
    y2 = jnp.where(jnp.logical_and(pos >= 0, pos < true_len), y2, 0.0)

    # conv2 (k=3, pad=1): taps as lane rolls (XLU) + aligned slices, fused
    # into a single matmul with K = 3*C_bn.
    t_ext = y2.shape[1]
    y2_prev = pltpu.roll(y2, 1, axis=1)[:, halo:halo + tile_l]           # y2[l-1]
    y2_mid = y2[:, halo:halo + tile_l]                                   # y2[l]
    y2_next = pltpu.roll(y2, t_ext - 1, axis=1)[:, halo:halo + tile_l]   # y2[l+1]
    y2_stack = jnp.concatenate([y2_prev, y2_mid, y2_next],
                               axis=0).astype(jnp.bfloat16)              # (3*C_bn, T)

    out = jnp.dot(w2_ref[...], y2_stack, preferred_element_type=jnp.float32)
    o_ref[0] = out.astype(o_ref.dtype)                                   # (C_out, T)


def _pick_tile_blocks(n128, c_in, c_bn, c_out,
                      budget_bytes=20 * 1024 * 1024, max_blocks=16):
    """Largest lane-tile width (in 128-lane blocks) whose per-step VMEM
    footprint (double-buffered I/O + in-kernel temporaries + weights) fits
    the budget.  Bigger tiles amortize the fixed 2*128-lane halo."""
    r = max(1, min(max_blocks, n128))
    while r > 1:
        tile_l = r * 128
        ext = tile_l + 2 * _HALO
        io_bytes = 2 * (c_in * ext * 2 + c_out * tile_l * 4)      # double-buffered
        tmp_bytes = (c_in * ext * 4                               # y1 (f32)
                     + 2 * c_bn * ext * 4                         # bott, y2 (f32)
                     + 2 * 3 * c_bn * tile_l * 2)                 # taps + stack (bf16)
        w_bytes = 2 * (c_bn * c_in * 2 + c_out * 3 * c_bn * 2)
        if io_bytes + tmp_bytes + w_bytes <= budget_bytes:
            return r
        r -= 1
    return 1


def dense_layer_forward(inputs, params, drop_rate=0.0):
    """inputs: list of NCL arrays (B, C_i, L) or one NCL array.
    Returns NCL (B, growth_rate, L).  Eval-mode semantics."""
    if isinstance(inputs, (list, tuple)):
        # TODO(synk): fold the DenseNet channel concat into the kernel
        # (per-input BlockSpecs + row-split of w1) to remove this HBM pass.
        x_ncl = inputs[0] if len(inputs) == 1 else jnp.concatenate(inputs, axis=1)
    else:
        x_ncl = inputs
    B, C_in, L = x_ncl.shape

    eps = 1e-5
    s1 = params["gamma1"] * jax.lax.rsqrt(params["var1"] + eps)
    b1 = params["beta1"] - params["mean1"] * s1
    s2 = params["gamma2"] * jax.lax.rsqrt(params["var2"] + eps)
    b2 = params["beta2"] - params["mean2"] * s2

    w1 = params["w1"][:, :, 0]                       # (C_bn, C_in)
    C_bn = w1.shape[0]
    C_out = params["w2"].shape[0]
    # (C_out, C_bn, 3) -> (C_out, 3*C_bn), row order matches [prev | mid | next].
    w2 = jnp.transpose(params["w2"], (0, 2, 1)).reshape(C_out, 3 * C_bn)

    # bf16 matmul operands (f32 accumulation); folded BN scale/bias stay f32.
    x = x_ncl.astype(jnp.bfloat16)
    w1 = w1.astype(jnp.bfloat16)
    w2 = w2.astype(jnp.bfloat16)
    s1 = s1.reshape(C_in, 1).astype(jnp.float32)
    b1 = b1.reshape(C_in, 1).astype(jnp.float32)
    s2 = s2.reshape(C_bn, 1).astype(jnp.float32)
    b2 = b2.reshape(C_bn, 1).astype(jnp.float32)

    # L-tiling: lane axis = L; adaptive tile width bounded by a VMEM budget
    # (comfortably inside v7x's 64 MiB VMEM even with double-buffering).
    n128 = pl.cdiv(L, 128)
    r = _pick_tile_blocks(n128, C_in, C_bn, C_out)   # tile width in 128-lane blocks
    tile_l = r * 128
    n_tiles = pl.cdiv(n128, r)
    l_pad = n_tiles * tile_l
    if l_pad != L:
        x = jnp.pad(x, ((0, 0), (0, 0), (0, l_pad - L)))
    n_blk128 = l_pad // 128

    kernel = functools.partial(_dense_layer_kernel,
                               true_len=L, tile_l=tile_l, halo=_HALO)

    out_pad = pl.pallas_call(
        kernel,
        out_shape=jax.ShapeDtypeStruct((B, C_out, l_pad), jnp.float32),
        grid_spec=pltpu.PrefetchScalarGridSpec(
            num_scalar_prefetch=0,
            grid=(B, n_tiles),
            in_specs=[
                # left halo: last 128-lane block of previous tile (clamped;
                # the in-kernel position mask zeroes it when j == 0)
                pl.BlockSpec((1, C_in, _HALO),
                             lambda b, j: (b, 0, jnp.maximum(j * r - 1, 0))),
                # main tile
                pl.BlockSpec((1, C_in, tile_l), lambda b, j: (b, 0, j)),
                # right halo: first 128-lane block of next tile (clamped)
                pl.BlockSpec((1, C_in, _HALO),
                             lambda b, j: (b, 0, jnp.minimum(j * r + r,
                                                             n_blk128 - 1))),
                pl.BlockSpec((C_bn, C_in), lambda b, j: (0, 0)),       # w1
                pl.BlockSpec((C_in, 1), lambda b, j: (0, 0)),          # s1
                pl.BlockSpec((C_in, 1), lambda b, j: (0, 0)),          # b1
                pl.BlockSpec((C_out, 3 * C_bn), lambda b, j: (0, 0)),  # w2
                pl.BlockSpec((C_bn, 1), lambda b, j: (0, 0)),          # s2
                pl.BlockSpec((C_bn, 1), lambda b, j: (0, 0)),          # b2
            ],
            out_specs=pl.BlockSpec((1, C_out, tile_l), lambda b, j: (b, 0, j)),
        ),
        compiler_params=pltpu.CompilerParams(
            dimension_semantics=("parallel", "parallel"),
            vmem_limit_bytes=32 * 1024 * 1024),
    )(x, x, x, w1, s1, b1, w2, s2, b2)

    # eval-mode dropout is identity (drop_rate unused at inference).
    # TODO(synk): training-mode dropout / batch-statistics BN not implemented.
    return out_pad[:, :, :L] if l_pad != L else out_pad


def make_params(key, num_input_features, growth_rate, bn_size):
    c_bn = bn_size * growth_rate
    keys = jax.random.split(key, 10)
    return {
        # BatchNorm1d(num_input_features)
        "gamma1": 1.0 + 0.1 * jax.random.normal(keys[0], (num_input_features,)),
        "beta1": 0.1 * jax.random.normal(keys[1], (num_input_features,)),
        "mean1": 0.05 * jax.random.normal(keys[2], (num_input_features,)),
        "var1": jnp.abs(1.0 + 0.1 * jax.random.normal(keys[3], (num_input_features,))),
        # Conv1d(num_input_features -> bn_size*growth_rate, k=1, bias=False)
        "w1": 0.1 * jax.random.normal(keys[4], (c_bn, num_input_features, 1)),
        # BatchNorm1d(bn_size*growth_rate)
        "gamma2": 1.0 + 0.1 * jax.random.normal(keys[5], (c_bn,)),
        "beta2": 0.1 * jax.random.normal(keys[6], (c_bn,)),
        "mean2": 0.05 * jax.random.normal(keys[7], (c_bn,)),
        "var2": jnp.abs(1.0 + 0.1 * jax.random.normal(keys[8], (c_bn,))),
        # Conv1d(bn_size*growth_rate -> growth_rate, k=3, pad=1, bias=False)
        "w2": 0.1 * jax.random.normal(keys[9], (growth_rate, c_bn, 3)),
    }


def _reference_forward(x_ncl, params):
    """Pure-JAX f32 reference (eval-mode _DenseLayer)."""
    eps = 1e-5
    s1 = params["gamma1"] / jnp.sqrt(params["var1"] + eps)
    b1 = params["beta1"] - params["mean1"] * s1
    s2 = params["gamma2"] / jnp.sqrt(params["var2"] + eps)
    b2 = params["beta2"] - params["mean2"] * s2
    y1 = jnp.maximum(x_ncl * s1[None, :, None] + b1[None, :, None], 0.0)
    bott = jnp.einsum("oc,bcl->bol", params["w1"][:, :, 0], y1)
    y2 = jnp.maximum(bott * s2[None, :, None] + b2[None, :, None], 0.0)
    L = x_ncl.shape[-1]
    y2p = jnp.pad(y2, ((0, 0), (0, 0), (1, 1)))
    return sum(jnp.einsum("oc,bcl->bol", params["w2"][:, :, k], y2p[:, :, k:k + L])
               for k in range(3))


if __name__ == "__main__":
    num_input_features = 4
    growth_rate = 8
    bn_size = 4
    B, L = 2, 16

    key = jax.random.PRNGKey(0)
    k_x, k_p = jax.random.split(key)
    x = jax.random.normal(k_x, (B, num_input_features, L), dtype=jnp.float32)  # NCL
    params = make_params(k_p, num_input_features, growth_rate, bn_size)

    out = dense_layer_forward([x], params, drop_rate=0.0)
    out = jax.block_until_ready(out)
    assert out.shape == (B, growth_rate, L), out.shape

    ref = _reference_forward(x, params)
    err = float(jnp.max(jnp.abs(out - ref)))
    assert err < 3e-2, f"max abs err vs reference: {err}"
    print("KERNEL_OK")
</pallas_src>

<mosaic_0001>
module attributes {stable_mosaic.version = 11 : i64} {
  func.func @_dense_layer_kernel(%arg0: i32, %arg1: i32, %arg2: memref<1x4x128xbf16, #tpu.memory_space<vmem>>, %arg3: memref<1x4x128xbf16, #tpu.memory_space<vmem>>, %arg4: memref<1x4x128xbf16, #tpu.memory_space<vmem>>, %arg5: memref<32x4xbf16, #tpu.memory_space<vmem>>, %arg6: memref<4x1xf32, #tpu.memory_space<vmem>>, %arg7: memref<4x1xf32, #tpu.memory_space<vmem>>, %arg8: memref<8x96xbf16, #tpu.memory_space<vmem>>, %arg9: memref<32x1xf32, #tpu.memory_space<vmem>>, %arg10: memref<32x1xf32, #tpu.memory_space<vmem>>, %arg11: memref<1x8x128xf32, #tpu.memory_space<vmem>>) attributes {dimension_semantics = [#tpu.dimension_semantics<parallel>, #tpu.dimension_semantics<parallel>], iteration_bounds = array<i64: 2, 1>, scalar_prefetch = 0 : i64, scratch_operands = 0 : i64, tpu.core_type = #tpu.core_type<tc>, window_params = [{transform_indices = @transform_0, window_bounds = array<i64: 1, 4, 128>}, {transform_indices = @transform_1, window_bounds = array<i64: 1, 4, 128>}, {transform_indices = @transform_2, window_bounds = array<i64: 1, 4, 128>}, {pipeline_mode = #tpu.pipeline_mode<synchronous>, transform_indices = @transform_3, window_bounds = array<i64: 32, 4>}, {pipeline_mode = #tpu.pipeline_mode<synchronous>, transform_indices = @transform_4, window_bounds = array<i64: 4, 1>}, {pipeline_mode = #tpu.pipeline_mode<synchronous>, transform_indices = @transform_5, window_bounds = array<i64: 4, 1>}, {pipeline_mode = #tpu.pipeline_mode<synchronous>, transform_indices = @transform_6, window_bounds = array<i64: 8, 96>}, {pipeline_mode = #tpu.pipeline_mode<synchronous>, transform_indices = @transform_7, window_bounds = array<i64: 32, 1>}, {pipeline_mode = #tpu.pipeline_mode<synchronous>, transform_indices = @transform_8, window_bounds = array<i64: 32, 1>}, {transform_indices = @transform_9, window_bounds = array<i64: 1, 8, 128>}]} {
    %c0 = arith.constant 0 : index
    %c0_0 = arith.constant 0 : index
    %c0_1 = arith.constant 0 : index
    %0 = vector.load %arg2[%c0, %c0_0, %c0_1] : memref<1x4x128xbf16, #tpu.memory_space<vmem>>, vector<1x4x128xbf16>
    %1 = vector.shape_cast %0 : vector<1x4x128xbf16> to vector<4x128xbf16>
    %c0_2 = arith.constant 0 : index
    %c0_3 = arith.constant 0 : index
    %c0_4 = arith.constant 0 : index
    %2 = vector.load %arg3[%c0_2, %c0_3, %c0_4] : memref<1x4x128xbf16, #tpu.memory_space<vmem>>, vector<1x4x128xbf16>
    %3 = vector.shape_cast %2 : vector<1x4x128xbf16> to vector<4x128xbf16>
    %c0_5 = arith.constant 0 : index
    %c0_6 = arith.constant 0 : index
    %c0_7 = arith.constant 0 : index
    %4 = vector.load %arg4[%c0_5, %c0_6, %c0_7] : memref<1x4x128xbf16, #tpu.memory_space<vmem>>, vector<1x4x128xbf16>
    %5 = vector.shape_cast %4 : vector<1x4x128xbf16> to vector<4x128xbf16>
    %6 = tpu.concatenate %1, %3, %5 in 1 : vector<4x128xbf16>, vector<4x128xbf16>, vector<4x128xbf16> -> vector<4x384xbf16>
    %c0_8 = arith.constant 0 : index
    %c0_9 = arith.constant 0 : index
    %7 = vector.load %arg6[%c0_8, %c0_9] : memref<4x1xf32, #tpu.memory_space<vmem>>, vector<4x1xf32>
    %8 = arith.extf %6 : vector<4x384xbf16> to vector<4x384xf32>
    %9 = vector.broadcast %7 : vector<4x1xf32> to vector<4x384xf32>
    %10 = arith.mulf %8, %9 : vector<4x384xf32>
    %c0_10 = arith.constant 0 : index
    %c0_11 = arith.constant 0 : index
    %11 = vector.load %arg7[%c0_10, %c0_11] : memref<4x1xf32, #tpu.memory_space<vmem>>, vector<4x1xf32>
    %12 = vector.broadcast %11 : vector<4x1xf32> to vector<4x384xf32>
    %13 = arith.addf %10, %12 : vector<4x384xf32>
    %cst = arith.constant 0.000000e+00 : f32
    %14 = vector.broadcast %cst : f32 to vector<4x384xf32>
    %15 = arith.maximumf %13, %14 : vector<4x384xf32>
    %c0_12 = arith.constant 0 : index
    %c0_13 = arith.constant 0 : index
    %16 = vector.load %arg5[%c0_12, %c0_13] : memref<32x4xbf16, #tpu.memory_space<vmem>>, vector<32x4xbf16>
    %17 = arith.truncf %15 : vector<4x384xf32> to vector<4x384xbf16>
    %cst_14 = arith.constant dense<0.000000e+00> : vector<32x384xf32>
    %18 = tpu.matmul %16, %17, %cst_14 {dimension_numbers = #tpu.dot_dimension_numbers<[1], [0], [0], [1], [0, 0, 1, 1], [], []>} : vector<32x4xbf16>, vector<4x384xbf16>, vector<32x384xf32> -> vector<32x384xf32>
    %c0_15 = arith.constant 0 : index
    %c0_16 = arith.constant 0 : index
    %19 = vector.load %arg9[%c0_15, %c0_16] : memref<32x1xf32, #tpu.memory_space<vmem>>, vector<32x1xf32>
    %20 = vector.broadcast %19 : vector<32x1xf32> to vector<32x384xf32>
    %21 = arith.mulf %18, %20 : vector<32x384xf32>
    %c0_17 = arith.constant 0 : index
    %c0_18 = arith.constant 0 : index
    %22 = vector.load %arg10[%c0_17, %c0_18] : memref<32x1xf32, #tpu.memory_space<vmem>>, vector<32x1xf32>
    %23 = vector.broadcast %22 : vector<32x1xf32> to vector<32x384xf32>
    %24 = arith.addf %21, %23 : vector<32x384xf32>
    %cst_19 = arith.constant 0.000000e+00 : f32
    %25 = vector.broadcast %cst_19 : f32 to vector<32x384xf32>
    %26 = arith.maximumf %24, %25 : vector<32x384xf32>
    %c128_i32 = arith.constant 128 : i32
    %27 = arith.muli %arg1, %c128_i32 : i32
    %c128_i32_20 = arith.constant 128 : i32
    %28 = arith.subi %27, %c128_i32_20 : i32
    %29 = tpu.iota {dimensions = array<i32: 1>} : vector<32x384xi32>
    %30 = vector.broadcast %28 : i32 to vector<32x384xi32>
    %31 = arith.addi %30, %29 : vector<32x384xi32>
    %c0_i32 = arith.constant 0 : i32
    %32 = vector.broadcast %c0_i32 : i32 to vector<32x384xi32>
    %33 = arith.cmpi sge, %31, %32 : vector<32x384xi32>
    %c16_i32 = arith.constant 16 : i32
    %34 = vector.broadcast %c16_i32 : i32 to vector<32x384xi32>
    %35 = arith.cmpi slt, %31, %34 : vector<32x384xi32>
    %36 = arith.andi %33, %35 : vector<32x384xi1>
    %cst_21 = arith.constant 0.000000e+00 : f32
    %37 = vector.broadcast %cst_21 : f32 to vector<32x384xf32>
    %38 = arith.select %36, %26, %37 : vector<32x384xi1>, vector<32x384xf32>
    %c1_i32 = arith.constant 1 : i32
    %39 = tpu.dynamic_rotate %38 by %c1_i32 dim 1 : vector<32x384xf32>, i32 -> vector<32x384xf32>
    %40 = vector.extract_strided_slice %39 {offsets = [0, 128], sizes = [32, 128], strides = [1, 1]} : vector<32x384xf32> to vector<32x128xf32>
    %41 = vector.extract_strided_slice %38 {offsets = [0, 128], sizes = [32, 128], strides = [1, 1]} : vector<32x384xf32> to vector<32x128xf32>
    %c383_i32 = arith.constant 383 : i32
    %42 = tpu.dynamic_rotate %38 by %c383_i32 dim 1 : vector<32x384xf32>, i32 -> vector<32x384xf32>
    %43 = vector.extract_strided_slice %42 {offsets = [0, 128], sizes = [32, 128], strides = [1, 1]} : vector<32x384xf32> to vector<32x128xf32>
    %44 = tpu.concatenate %40, %41, %43 in 0 : vector<32x128xf32>, vector<32x128xf32>, vector<32x128xf32> -> vector<96x128xf32>
    %45 = arith.truncf %44 : vector<96x128xf32> to vector<96x128xbf16>
    %c0_22 = arith.constant 0 : index
    %c0_23 = arith.constant 0 : index
    %46 = vector.load %arg8[%c0_22, %c0_23] : memref<8x96xbf16, #tpu.memory_space<vmem>>, vector<8x96xbf16>
    %cst_24 = arith.constant dense<0.000000e+00> : vector<8x128xf32>
    %47 = tpu.matmul %46, %45, %cst_24 {dimension_numbers = #tpu.dot_dimension_numbers<[1], [0], [0], [1], [0, 0, 1, 1], [], []>} : vector<8x96xbf16>, vector<96x128xbf16>, vector<8x128xf32> -> vector<8x128xf32>
    %c0_25 = arith.constant 0 : index
    %c0_26 = arith.constant 0 : index
    %c0_27 = arith.constant 0 : index
    %48 = vector.load %arg11[%c0_25, %c0_26, %c0_27] : memref<1x8x128xf32, #tpu.memory_space<vmem>>, vector<1x8x128xf32>
    %49 = vector.shape_cast %48 : vector<1x8x128xf32> to vector<8x128xf32>
    %50 = vector.shape_cast %47 : vector<8x128xf32> to vector<1x8x128xf32>
    tpu.vector_store %arg11[%c0_25, %c0_26, %c0_27], %50 {strides = array<i32>} : memref<1x8x128xf32, #tpu.memory_space<vmem>>, vector<1x8x128xf32>,
    return
  }
  func.func @transform_0(%arg0: i32, %arg1: i32) -> (i32, i32, i32) {
    %c1_i32 = arith.constant 1 : i32
    %0 = arith.muli %arg1, %c1_i32 : i32
    %c1_i32_0 = arith.constant 1 : i32
    %1 = arith.subi %0, %c1_i32_0 : i32
    %c0_i32 = arith.constant 0 : i32
    %2 = arith.maxsi %1, %c0_i32 : i32
    %c0_i32_1 = arith.constant 0 : i32
    %c0_i32_2 = arith.constant 0 : i32
    return %arg0, %c0_i32_1, %2 : i32, i32, i32
  }
  func.func @transform_1(%arg0: i32, %arg1: i32) -> (i32, i32, i32) {
    %c0_i32 = arith.constant 0 : i32
    %c0_i32_0 = arith.constant 0 : i32
    return %arg0, %c0_i32, %arg1 : i32, i32, i32
  }
  func.func @transform_2(%arg0: i32, %arg1: i32) -> (i32, i32, i32) {
    %c1_i32 = arith.constant 1 : i32
    %0 = arith.muli %arg1, %c1_i32 : i32
    %c1_i32_0 = arith.constant 1 : i32
    %1 = arith.addi %0, %c1_i32_0 : i32
    %c0_i32 = arith.constant 0 : i32
    %2 = arith.minsi %1, %c0_i32 : i32
    %c0_i32_1 = arith.constant 0 : i32
    %c0_i32_2 = arith.constant 0 : i32
    return %arg0, %c0_i32_1, %2 : i32, i32, i32
  }
  func.func @transform_3(%arg0: i32, %arg1: i32) -> (i32, i32) {
    %c0_i32 = arith.constant 0 : i32
    %c0_i32_0 = arith.constant 0 : i32
    %c0_i32_1 = arith.constant 0 : i32
    return %c0_i32, %c0_i32_0 : i32, i32
  }
  func.func @transform_4(%arg0: i32, %arg1: i32) -> (i32, i32) {
    %c0_i32 = arith.constant 0 : i32
    %c0_i32_0 = arith.constant 0 : i32
    %c0_i32_1 = arith.constant 0 : i32
    return %c0_i32, %c0_i32_0 : i32, i32
  }
  func.func @transform_5(%arg0: i32, %arg1: i32) -> (i32, i32) {
    %c0_i32 = arith.constant 0 : i32
    %c0_i32_0 = arith.constant 0 : i32
    %c0_i32_1 = arith.constant 0 : i32
    return %c0_i32, %c0_i32_0 : i32, i32
  }
  func.func @transform_6(%arg0: i32, %arg1: i32) -> (i32, i32) {
    %c0_i32 = arith.constant 0 : i32
    %c0_i32_0 = arith.constant 0 : i32
    %c0_i32_1 = arith.constant 0 : i32
    return %c0_i32, %c0_i32_0 : i32, i32
  }
  func.func @transform_7(%arg0: i32, %arg1: i32) -> (i32, i32) {
    %c0_i32 = arith.constant 0 : i32
    %c0_i32_0 = arith.constant 0 : i32
    %c0_i32_1 = arith.constant 0 : i32
    return %c0_i32, %c0_i32_0 : i32, i32
  }
  func.func @transform_8(%arg0: i32, %arg1: i32) -> (i32, i32) {
    %c0_i32 = arith.constant 0 : i32
    %c0_i32_0 = arith.constant 0 : i32
    %c0_i32_1 = arith.constant 0 : i32
    return %c0_i32, %c0_i32_0 : i32, i32
  }
  func.func @transform_9(%arg0: i32, %arg1: i32) -> (i32, i32, i32) {
    %c0_i32 = arith.constant 0 : i32
    %c0_i32_0 = arith.constant 0 : i32
    return %arg0, %c0_i32, %arg1 : i32, i32, i32
  }
}

</mosaic_0001>

<llo_original>
// kernel: tpu_custom_call.1
$region0: #{tpu_custom_call.1}
  #allocation0 [shape = 'u32[]', space=smem, size = 0x4, offset = 0x4, fixed_abs, tag = 'smem constant byte address 0x4 - core index']
  #allocation1 [shape = 'u32[144,128]{1,0:T(1,128)}', space=vmem, size = 0x12000, scoped, tag = 'internal scratch']
  %s0 = inlined_call_operand.vmem [shape: bf16[2,4,128], index: 0, kind: input, shape index: {}]
  %s1 = inlined_call_operand.vmem [shape: bf16[2,4,128], index: 1, kind: input, shape index: {}]
  %s2 = inlined_call_operand.vmem [shape: bf16[2,4,128], index: 2, kind: input, shape index: {}]
  %s3 = inlined_call_operand.vmem [shape: bf16[32,4], index: 3, kind: input, shape index: {}]
  %s4 = inlined_call_operand.vmem [shape: f32[4,1], index: 4, kind: input, shape index: {}]
  %s5 = inlined_call_operand.vmem [shape: f32[4,1], index: 5, kind: input, shape index: {}]
  %s6 = inlined_call_operand.vmem [shape: bf16[8,96], index: 6, kind: input, shape index: {}]
  %s7 = inlined_call_operand.vmem [shape: f32[32,1], index: 7, kind: input, shape index: {}]
  %s8 = inlined_call_operand.vmem [shape: f32[32,1], index: 8, kind: input, shape index: {}]
  %s9 = inlined_call_operand.hbm [shape: f32[2,8,128], index: 9, kind: output, shape index: {}]
  %s10 = sld [smem:[#allocation0]]
  $region69: #{tpu_custom_call.1} parent=0
    _
  %s12 = ssub.s32 1, %s10
  %s13 = scalar_select 0, %s12, %s10
  $region1: #{tpu_custom_call.1} parent=0
    #allocation2 [shape = 'u8[8192]{0}', space=vmem, size = 0x2000, scoped, tag = 'output window, operand 0']
    #allocation3 [shape = 's32[2]{0}', space=sflag, size = 0x8, scoped, tag = 'scoped memory for tpu_custom_call.1']
    %14 = vsyncpa [#allocation3], 0
    %s15 = scalar_lea.sflag [#allocation3], 1
    %16 = vsyncpa %s15, 0
    loop: start=0, step=1, limit=4
    $region2: #{tpu_custom_call.1} parent=1 // loop_pre_header
      _
    $region3: #{tpu_custom_call.1} parent=1 // loop_header
      %s18 = sphi 0, %s22
      %p19 = scmp.ge.s32.totalorder %s18, 4
      %s25 = sphi 0, %s37
      %s26 = sphi 0, %s33
      %s27 = sphi 0, %s25
      %s28 = sphi 0, %s26
      %s29 = sphi 0, %s27
      %s30 = sphi 0, %s28
      %s48 = sphi 0, %s50
      %s51 = sphi 0, %s48
      %s52 = sphi 0, %s51
      %s68 = sphi 0, %s52
      %s76 = sphi 0, %s78
      %s79 = sphi 0, %s76
      %s80 = sphi 0, %s79
      %s96 = sphi 0, %s80
      %s110 = sphi 0, %s112
      %s113 = sphi 0, %s110
      %s114 = sphi 0, %s113
      %s130 = sphi 0, %s114
      %s134 = sphi 0, %s134
      %s136 = sphi 0, %s134
      %s137 = sphi 0, %s136
      %s151 = sphi 0, %s137
      %s155 = sphi 0, %s155
      %s157 = sphi 0, %s155
      %s158 = sphi 0, %s157
      %s172 = sphi 0, %s158
      %s176 = sphi 0, %s176
      %s178 = sphi 0, %s176
      %s179 = sphi 0, %s178
      %s193 = sphi 0, %s179
      %s197 = sphi 0, %s197
      %s199 = sphi 0, %s197
      %s200 = sphi 0, %s199
      %s214 = sphi 0, %s200
      %s218 = sphi 0, %s218
      %s220 = sphi 0, %s218
      %s221 = sphi 0, %s220
      %s235 = sphi 0, %s221
      %s239 = sphi 0, %s239
      %s241 = sphi 0, %s239
      %s242 = sphi 0, %s241
      %s256 = sphi 0, %s242
      %s264 = sphi 0, %s266
      %s267 = sphi 0, %s264
      %s268 = sphi 0, %s267
      %s284 = sphi 0, %s268
    $region4: #{tpu_custom_call.1} parent=1 // loop_header_branch
      %21 = sbr.rel (%p19) target = $region8
    $region5: #{tpu_custom_call.1} parent=1 // loop_body
      %s23 = ssub.s32 %s18, 1
      %s24 = ssub.s32 %s18, 2
      %s31 = sadd.s32 1, %s26
      %p32 = scmp.ge.s32.totalorder %s31, 1
      %s33 = scalar_select %p32, 0, %s31
      %s34 = sadd.s32 1, %s25
      %s35 = scalar_select %p32, %s34, %s25
      %p36 = scmp.ge.s32.totalorder %s35, 2
      %s37 = scalar_select %p36, 0, %s35
      %s38 = ssub.s32 %s26, 1
      %p39 = scmp.gt.s32.totalorder %s38, 0
      %s40 = scalar_select %p39, %s38, 0
      %s41 = ssub.s32 %s33, 1
      %p42 = scmp.gt.s32.totalorder %s41, 0
      %s43 = scalar_select %p42, %s41, 0
      %s44 = ssub.s32 %s25, %s37
      %s45 = ssub.s32 %s40, %s43
      %s46 = sor.u32 %s44, %s45
      %p47 = scmp.eq.s32.totalorder %s46, 0
      %s49 = sadd.s32 %s48, 1
      %s50 = scalar_select %p47, %s48, %s49
      %p53 = pneg %p47
      %p54 = scmp.eq.s32.totalorder %s18, 1
      %p55 = por %p53, %p54
      %p56 = scmp.ne.s32.totalorder %s48, %s51
      %p57 = scmp.eq.s32.totalorder %s18, 0
      %p58 = por %p56, %p57
      %p59 = scmp.ne.s32.totalorder %s48, %s51
      %p60 = scmp.eq.s32.totalorder %s23, 1
      %p61 = por %p59, %p60
      %p62 = scmp.ne.s32.totalorder %s51, %s52
      %p63 = scmp.eq.s32.totalorder %s23, 0
      %p64 = por %p62, %p63
      %p65 = scmp.ne.s32.totalorder %s51, %s52
      %p66 = scmp.eq.s32.totalorder %s24, 1
      %p67 = por %p65, %p66
      %p69 = scmp.ne.s32.totalorder %s52, %s68
      %p70 = scmp.eq.s32.totalorder %s24, 0
      %p71 = por %p69, %p70
      %s72 = ssub.s32 %s25, %s37
      %s73 = ssub.s32 %s26, %s33
      %s74 = sor.u32 %s72, %s73
      %p75 = scmp.eq.s32.totalorder %s74, 0
      %s77 = sadd.s32 %s76, 1
      %s78 = scalar_select %p75, %s76, %s77
      %p81 = pneg %p75
      %p82 = scmp.eq.s32.totalorder %s18, 1
      %p83 = por %p81, %p82
      %p84 = scmp.ne.s32.totalorder %s76, %s79
      %p85 = scmp.eq.s32.totalorder %s18, 0
      %p86 = por %p84, %p85
      %p87 = scmp.ne.s32.totalorder %s76, %s79
      %p88 = scmp.eq.s32.totalorder %s23, 1
      %p89 = por %p87, %p88
      %p90 = scmp.ne.s32.totalorder %s79, %s80
      %p91 = scmp.eq.s32.totalorder %s23, 0
      %p92 = por %p90, %p91
      %p93 = scmp.ne.s32.totalorder %s79, %s80
      %p94 = scmp.eq.s32.totalorder %s24, 1
      %p95 = por %p93, %p94
      %p97 = scmp.ne.s32.totalorder %s80, %s96
      %p98 = scmp.eq.s32.totalorder %s24, 0
      %p99 = por %p97, %p98
      %s100 = sadd.s32 %s26, 1
      %p101 = scmp.lt.s32.totalorder %s100, 0
      %s102 = scalar_select %p101, %s100, 0
      %s103 = sadd.s32 %s33, 1
      %p104 = scmp.lt.s32.totalorder %s103, 0
      %s105 = scalar_select %p104, %s103, 0
      %s106 = ssub.s32 %s25, %s37
      %s107 = ssub.s32 %s102, %s105
      %s108 = sor.u32 %s106, %s107
      %p109 = scmp.eq.s32.totalorder %s108, 0
      %s111 = sadd.s32 %s110, 1
      %s112 = scalar_select %p109, %s110, %s111
      %p115 = pneg %p109
      %p116 = scmp.eq.s32.totalorder %s18, 1
      %p117 = por %p115, %p116
      %p118 = scmp.ne.s32.totalorder %s110, %s113
      %p119 = scmp.eq.s32.totalorder %s18, 0
      %p120 = por %p118, %p119
      %p121 = scmp.ne.s32.totalorder %s110, %s113
      %p122 = scmp.eq.s32.totalorder %s23, 1
      %p123 = por %p121, %p122
      %p124 = scmp.ne.s32.totalorder %s113, %s114
      %p125 = scmp.eq.s32.totalorder %s23, 0
      %p126 = por %p124, %p125
      %p127 = scmp.ne.s32.totalorder %s113, %s114
      %p128 = scmp.eq.s32.totalorder %s24, 1
      %p129 = por %p127, %p128
      %p131 = scmp.ne.s32.totalorder %s114, %s130
      %p132 = scmp.eq.s32.totalorder %s24, 0
      %p133 = por %p131, %p132
      %s135 = sadd.s32 %s134, 1
      %p138 = scmp.eq.s32.totalorder %s18, 1
      %p139 = scmp.ne.s32.totalorder %s134, %s136
      %p140 = scmp.eq.s32.totalorder %s18, 0
      %p141 = por %p139, %p140
      %p142 = scmp.ne.s32.totalorder %s134, %s136
      %p143 = scmp.eq.s32.totalorder %s23, 1
      %p144 = por %p142, %p143
      %p145 = scmp.ne.s32.totalorder %s136, %s137
      %p146 = scmp.eq.s32.totalorder %s23, 0
      %p147 = por %p145, %p146
      %p148 = scmp.ne.s32.totalorder %s136, %s137
      %p149 = scmp.eq.s32.totalorder %s24, 1
      %p150 = por %p148, %p149
      %p152 = scmp.ne.s32.totalorder %s137, %s151
      %p153 = scmp.eq.s32.totalorder %s24, 0
      %p154 = por %p152, %p153
      %s156 = sadd.s32 %s155, 1
      %p159 = scmp.eq.s32.totalorder %s18, 1
      %p160 = scmp.ne.s32.totalorder %s155, %s157
      %p161 = scmp.eq.s32.totalorder %s18, 0
      %p162 = por %p160, %p161
      %p163 = scmp.ne.s32.totalorder %s155, %s157
      %p164 = scmp.eq.s32.totalorder %s23, 1
      %p165 = por %p163, %p164
      %p166 = scmp.ne.s32.totalorder %s157, %s158
      %p167 = scmp.eq.s32.totalorder %s23, 0
      %p168 = por %p166, %p167
      %p169 = scmp.ne.s32.totalorder %s157, %s158
      %p170 = scmp.eq.s32.totalorder %s24, 1
      %p171 = por %p169, %p170
      %p173 = scmp.ne.s32.totalorder %s158, %s172
      %p174 = scmp.eq.s32.totalorder %s24, 0
      %p175 = por %p173, %p174
      %s177 = sadd.s32 %s176, 1
      %p180 = scmp.eq.s32.totalorder %s18, 1
      %p181 = scmp.ne.s32.totalorder %s176, %s178
      %p182 = scmp.eq.s32.totalorder %s18, 0
      %p183 = por %p181, %p182
      %p184 = scmp.ne.s32.totalorder %s176, %s178
      %p185 = scmp.eq.s32.totalorder %s23, 1
      %p186 = por %p184, %p185
      %p187 = scmp.ne.s32.totalorder %s178, %s179
      %p188 = scmp.eq.s32.totalorder %s23, 0
      %p189 = por %p187, %p188
      %p190 = scmp.ne.s32.totalorder %s178, %s179
      %p191 = scmp.eq.s32.totalorder %s24, 1
      %p192 = por %p190, %p191
      %p194 = scmp.ne.s32.totalorder %s179, %s193
      %p195 = scmp.eq.s32.totalorder %s24, 0
      %p196 = por %p194, %p195
      %s198 = sadd.s32 %s197, 1
      %p201 = scmp.eq.s32.totalorder %s18, 1
      %p202 = scmp.ne.s32.totalorder %s197, %s199
      %p203 = scmp.eq.s32.totalorder %s18, 0
      %p204 = por %p202, %p203
      %p205 = scmp.ne.s32.totalorder %s197, %s199
      %p206 = scmp.eq.s32.totalorder %s23, 1
      %p207 = por %p205, %p206
      %p208 = scmp.ne.s32.totalorder %s199, %s200
      %p209 = scmp.eq.s32.totalorder %s23, 0
      %p210 = por %p208, %p209
      %p211 = scmp.ne.s32.totalorder %s199, %s200
      %p212 = scmp.eq.s32.totalorder %s24, 1
      %p213 = por %p211, %p212
      %p215 = scmp.ne.s32.totalorder %s200, %s214
      %p216 = scmp.eq.s32.totalorder %s24, 0
      %p217 = por %p215, %p216
      %s219 = sadd.s32 %s218, 1
      %p222 = scmp.eq.s32.totalorder %s18, 1
      %p223 = scmp.ne.s32.totalorder %s218, %s220
      %p224 = scmp.eq.s32.totalorder %s18, 0
      %p225 = por %p223, %p224
      %p226 = scmp.ne.s32.totalorder %s218, %s220
      %p227 = scmp.eq.s32.totalorder %s23, 1
      %p228 = por %p226, %p227
      %p229 = scmp.ne.s32.totalorder %s220, %s221
      %p230 = scmp.eq.s32.totalorder %s23, 0
      %p231 = por %p229, %p230
      %p232 = scmp.ne.s32.totalorder %s220, %s221
      %p233 = scmp.eq.s32.totalorder %s24, 1
      %p234 = por %p232, %p233
      %p236 = scmp.ne.s32.totalorder %s221, %s235
      %p237 = scmp.eq.s32.totalorder %s24, 0
      %p238 = por %p236, %p237
      %s240 = sadd.s32 %s239, 1
      %p243 = scmp.eq.s32.totalorder %s18, 1
      %p244 = scmp.ne.s32.totalorder %s239, %s241
      %p245 = scmp.eq.s32.totalorder %s18, 0
      %p246 = por %p244, %p245
      %p247 = scmp.ne.s32.totalorder %s239, %s241
      %p248 = scmp.eq.s32.totalorder %s23, 1
      %p249 = por %p247, %p248
      %p250 = scmp.ne.s32.totalorder %s241, %s242
      %p251 = scmp.eq.s32.totalorder %s23, 0
      %p252 = por %p250, %p251
      %p253 = scmp.ne.s32.totalorder %s241, %s242
      %p254 = scmp.eq.s32.totalorder %s24, 1
      %p255 = por %p253, %p254
      %p257 = scmp.ne.s32.totalorder %s242, %s256
      %p258 = scmp.eq.s32.totalorder %s24, 0
      %p259 = por %p257, %p258
      %s260 = ssub.s32 %s25, %s37
      %s261 = ssub.s32 %s26, %s33
      %s262 = sor.u32 %s260, %s261
      %p263 = scmp.eq.s32.totalorder %s262, 0
      %s265 = sadd.s32 %s264, 1
      %s266 = scalar_select %p263, %s264, %s265
      %p269 = pneg %p263
      %p270 = scmp.eq.s32.totalorder %s18, 1
      %p271 = por %p269, %p270
      %p272 = scmp.ne.s32.totalorder %s264, %s267
      %p273 = scmp.eq.s32.totalorder %s18, 0
      %p274 = por %p272, %p273
      %p275 = scmp.ne.s32.totalorder %s264, %s267
      %p276 = scmp.eq.s32.totalorder %s23, 1
      %p277 = por %p275, %p276
      %p278 = scmp.ne.s32.totalorder %s267, %s268
      %p279 = scmp.eq.s32.totalorder %s23, 0
      %p280 = por %p278, %p279
      %p281 = scmp.ne.s32.totalorder %s267, %s268
      %p282 = scmp.eq.s32.totalorder %s24, 1
      %p283 = por %p281, %p282
      %p285 = scmp.ne.s32.totalorder %s268, %s284
      %p286 = scmp.eq.s32.totalorder %s24, 0
      %p287 = por %p285, %p286
      %p288 = scmp.le.s32.totalorder 1, %s18
      %p289 = scmp.lt.s32.totalorder %s18, 3
      %p290 = pnand %p288, %p289
      %p291 = pneg %p290
      // Predicated region
      $region9: #{tpu_custom_call.1} parent=5 // pred_check
        _
      $region10: #{tpu_custom_call.1} parent=5 // pred_check_branch
        %293 = sbr.rel (%p290) target = $region12
      $region11: #{tpu_custom_call.1} parent=5 // pred_region
        %s294 = ssub.s32 %s18, 1
        // Predicated region
        $region13: #{tpu_custom_call.1} parent=11 // pred_check
          %p295 = pneg %p147
        $region14: #{tpu_custom_call.1} parent=11 // pred_check_branch
          %297 = sbr.rel (%p295) target = $region16
        $region15: #{tpu_custom_call.1} parent=11 // pred_region
          _
        $region16: #{tpu_custom_call.1} parent=11 // pred_fallthru
          _
        // Predicated region
        $region17: #{tpu_custom_call.1} parent=11 // pred_check
          %p298 = pneg %p168
        $region18: #{tpu_custom_call.1} parent=11 // pred_check_branch
          %300 = sbr.rel (%p298) target = $region20
        $region19: #{tpu_custom_call.1} parent=11 // pred_region
          _
        $region20: #{tpu_custom_call.1} parent=11 // pred_fallthru
          _
        // Predicated region
        $region21: #{tpu_custom_call.1} parent=11 // pred_check
          %p301 = pneg %p189
        $region22: #{tpu_custom_call.1} parent=11 // pred_check_branch
          %303 = sbr.rel (%p301) target = $region24
        $region23: #{tpu_custom_call.1} parent=11 // pred_region
          _
        $region24: #{tpu_custom_call.1} parent=11 // pred_fallthru
          _
        // Predicated region
        $region25: #{tpu_custom_call.1} parent=11 // pred_check
          %p304 = pneg %p210
        $region26: #{tpu_custom_call.1} parent=11 // pred_check_branch
          %306 = sbr.rel (%p304) target = $region28
        $region27: #{tpu_custom_call.1} parent=11 // pred_region
          _
        $region28: #{tpu_custom_call.1} parent=11 // pred_fallthru
          _
        // Predicated region
        $region29: #{tpu_custom_call.1} parent=11 // pred_check
          %p307 = pneg %p231
        $region30: #{tpu_custom_call.1} parent=11 // pred_check_branch
          %309 = sbr.rel (%p307) target = $region32
        $region31: #{tpu_custom_call.1} parent=11 // pred_region
          _
        $region32: #{tpu_custom_call.1} parent=11 // pred_fallthru
          _
        // Predicated region
        $region33: #{tpu_custom_call.1} parent=11 // pred_check
          %p310 = pneg %p252
        $region34: #{tpu_custom_call.1} parent=11 // pred_check_branch
          %312 = sbr.rel (%p310) target = $region36
        $region35: #{tpu_custom_call.1} parent=11 // pred_region
          _
        $region36: #{tpu_custom_call.1} parent=11 // pred_fallthru
          _
      $region12: #{tpu_custom_call.1} parent=5 // pred_fallthru
        _
      %p313 = scmp.lt.s32.totalorder %s18, 2
      // Predicated region
      $region37: #{tpu_custom_call.1} parent=5 // pred_check
        %p314 = pneg %p313
      $region38: #{tpu_custom_call.1} parent=5 // pred_check_branch
        %316 = sbr.rel (%p314) target = $region40
      $region39: #{tpu_custom_call.1} parent=5 // pred_region
        // Predicated region
        $region41: #{tpu_custom_call.1} parent=39 // pred_check
          %p317 = pneg %p58
        $region42: #{tpu_custom_call.1} parent=39 // pred_check_branch
          %319 = sbr.rel (%p317) target = $region44
        $region43: #{tpu_custom_call.1} parent=39 // pred_region
          %s320 = ssub.s32 %s26, 1
          %p321 = scmp.gt.s32.totalorder %s320, 0
          %s322 = scalar_select %p321, %s320, 0
          %p323 = scmp.lt.s32.totalorder %s25, 1
          %s324 = scalar_select %p323, %s25, 1
          %p325 = scmp.lt.s32.totalorder %s322, 0
          %s326 = scalar_select %p325, %s322, 0
          %s327 = sadd.s32 %s326, %s324
          %s328 = smul.addr %s327, 2
          %s329 = scalar_lea.vmem %s0, %s328
          %s330 = ssub.s32 %s26, 1
          %p331 = scmp.gt.s32.totalorder %s330, 0
          %s332 = scalar_select %p331, %s330, 0
        $region44: #{tpu_custom_call.1} parent=39 // pred_fallthru
          _
        // Predicated region
        $region45: #{tpu_custom_call.1} parent=39 // pred_check
          %p333 = pneg %p86
        $region46: #{tpu_custom_call.1} parent=39 // pred_check_branch
          %335 = sbr.rel (%p333) target = $region48
        $region47: #{tpu_custom_call.1} parent=39 // pred_region
          %p336 = scmp.lt.s32.totalorder %s25, 1
          %s337 = scalar_select %p336, %s25, 1
          %p338 = scmp.lt.s32.totalorder %s26, 0
          %s339 = scalar_select %p338, %s26, 0
          %s340 = sadd.s32 %s339, %s337
          %s341 = smul.addr %s340, 2
          %s342 = scalar_lea.vmem %s1, %s341
        $region48: #{tpu_custom_call.1} parent=39 // pred_fallthru
          _
        // Predicated region
        $region49: #{tpu_custom_call.1} parent=39 // pred_check
          %p343 = pneg %p120
        $region50: #{tpu_custom_call.1} parent=39 // pred_check_branch
          %345 = sbr.rel (%p343) target = $region52
        $region51: #{tpu_custom_call.1} parent=39 // pred_region
          %s346 = sadd.s32 %s26, 1
          %p347 = scmp.lt.s32.totalorder %s346, 0
          %s348 = scalar_select %p347, %s346, 0
          %p349 = scmp.lt.s32.totalorder %s25, 1
          %s350 = scalar_select %p349, %s25, 1
          %p351 = scmp.lt.s32.totalorder %s348, 0
          %s352 = scalar_select %p351, %s348, 0
          %s353 = sadd.s32 %s352, %s350
          %s354 = smul.addr %s353, 2
          %s355 = scalar_lea.vmem %s2, %s354
          %s356 = sadd.s32 %s26, 1
          %p357 = scmp.lt.s32.totalorder %s356, 0
          %s358 = scalar_select %p357, %s356, 0
        $region52: #{tpu_custom_call.1} parent=39 // pred_fallthru
          _
      $region40: #{tpu_custom_call.1} parent=5 // pred_fallthru
        _
      %p359 = scmp.le.s32.totalorder 1, %s18
      %p360 = scmp.lt.s32.totalorder %s18, 3
      %p361 = pnand %p359, %p360
      %p362 = pneg %p361
      // Predicated region
      $region53: #{tpu_custom_call.1} parent=5 // pred_check
        _
      $region54: #{tpu_custom_call.1} parent=5 // pred_check_branch
        %364 = sbr.rel (%p361) target = $region56
      $region55: #{tpu_custom_call.1} parent=5 // pred_region
        %s365 = ssub.s32 %s18, 1
        %s366 = ssub.s32 %s28, 1
        %p367 = scmp.gt.s32.totalorder %s366, 0
        %s368 = scalar_select %p367, %s366, 0
        %p369 = scmp.lt.s32.totalorder %s27, 1
        %s370 = scalar_select %p369, %s27, 1
        %p371 = scmp.lt.s32.totalorder %s368, 0
        %s372 = scalar_select %p371, %s368, 0
        %s373 = sadd.s32 %s372, %s370
        %s374 = smul.addr %s373, 2
        %s375 = scalar_lea.vmem %s0, %s374
        %p376 = pneg %p64
        %p377 = pneg %p61
        %p378 = scmp.lt.s32.totalorder %s27, 1
        %s379 = scalar_select %p378, %s27, 1
        %p380 = scmp.lt.s32.totalorder %s28, 0
        %s381 = scalar_select %p380, %s28, 0
        %s382 = sadd.s32 %s381, %s379
        %s383 = smul.addr %s382, 2
        %s384 = scalar_lea.vmem %s1, %s383
        %p385 = pneg %p92
        %p386 = pneg %p89
        %s387 = sadd.s32 %s28, 1
        %p388 = scmp.lt.s32.totalorder %s387, 0
        %s389 = scalar_select %p388, %s387, 0
        %p390 = scmp.lt.s32.totalorder %s27, 1
        %s391 = scalar_select %p390, %s27, 1
        %p392 = scmp.lt.s32.totalorder %s389, 0
        %s393 = scalar_select %p392, %s389, 0
        %s394 = sadd.s32 %s393, %s391
        %s395 = smul.addr %s394, 2
        %s396 = scalar_lea.vmem %s2, %s395
        %p397 = pneg %p126
        %p398 = pneg %p123
        %p399 = pneg %p147
        %p400 = pneg %p144
        %p401 = pneg %p168
        %p402 = pneg %p165
        %p403 = pneg %p189
        %p404 = pneg %p186
        %p405 = pneg %p210
        %p406 = pneg %p207
        %p407 = pneg %p231
        %p408 = pneg %p228
        %p409 = pneg %p252
        %p410 = pneg %p249
        %p411 = pneg %p280
        %p412 = pneg %p277
        %s413 = sand.u32 %s267, 1
        %s414 = scalar_lea.sflag [#allocation3], %s413
        %s415 = sand.u32 %s267, 1
        %s416 = smul.addr %s415, 8
        %s417 = scalar_lea.vmem [#allocation2], %s416
        %s418 = ssub.s32 %s28, 1
        %p419 = scmp.gt.s32.totalorder %s418, 0
        %s420 = scalar_select %p419, %s418, 0
        %p421 = scmp.lt.s32.totalorder %s27, 1
        %s422 = scalar_select %p421, %s27, 1
        %p423 = scmp.lt.s32.totalorder %s420, 0
        %s424 = scalar_select %p423, %s420, 0
        %s425 = sadd.s32 %s424, %s422
        %s426 = smul.addr %s425, 2
        %s427 = scalar_lea.vmem %s0, %s426
        %s428 = ssub.s32 %s28, 1
        %p429 = scmp.gt.s32.totalorder %s428, 0
        %s430 = scalar_select %p429, %s428, 0
        %p431 = scmp.lt.s32.totalorder %s27, 1
        %s432 = scalar_select %p431, %s27, 1
        %p433 = scmp.lt.s32.totalorder %s28, 0
        %s434 = scalar_select %p433, %s28, 0
        %s435 = sadd.s32 %s434, %s432
        %s436 = smul.addr %s435, 2
        %s437 = scalar_lea.vmem %s1, %s436
        %s438 = sadd.s32 %s28, 1
        %p439 = scmp.lt.s32.totalorder %s438, 0
        %s440 = scalar_select %p439, %s438, 0
        %p441 = scmp.lt.s32.totalorder %s27, 1
        %s442 = scalar_select %p441, %s27, 1
        %p443 = scmp.lt.s32.totalorder %s440, 0
        %s444 = scalar_select %p443, %s440, 0
        %s445 = sadd.s32 %s444, %s442
        %s446 = smul.addr %s445, 2
        %s447 = scalar_lea.vmem %s2, %s446
        %s448 = sadd.s32 %s28, 1
        %p449 = scmp.lt.s32.totalorder %s448, 0
        %s450 = scalar_select %p449, %s448, 0
        %v452 = vld [vmem:[%s427] sm:$0x3]
        %v453 = vld [vmem:[%s437] sm:$0x3]
        %v454 = vld [vmem:[%s447] sm:$0x3]
        %v455 = vld [vmem:[%s4] sm:$0xf]
        %v456 = vunpack.c.l.bf16 %v452
        %v457 = vunpack.c.l.bf16 %v453
        %v458 = vunpack.c.l.bf16 %v454
        %460 = vset.pattern.permute.xlu0 0
        %461 = vperm.xlu0 %460, %v455
        %v462 = vpop.permute.xlu0 %461
        %v464 = vmul.f32 %v456, %v462
        %v465 = vmul.f32 %v457, %v462
        %v466 = vmul.f32 %v458, %v462
        %v467 = vld [vmem:[%s5] sm:$0xf]
        %469 = vset.pattern.permute.xlu0 0
        %470 = vperm.xlu0 %469, %v467
        %v471 = vpop.permute.xlu0 %470
        %v473 = vadd.f32 %v464, %v471
        %v474 = vadd.f32 %v465, %v471
        %v475 = vadd.f32 %v466, %v471
        %v476 = vmax.f32 %v473, 0.0
        %v477 = vmax.f32 %v474, 0.0
        %v478 = vmax.f32 %v475, 0.0
        %v479 = vld [vmem:[%s3] sm:$0xf]
        %v480 = vld [vmem:[%s3 + $0x4] sm:$0xf]
        %v481 = vld [vmem:[%s3 + $0x8] sm:$0xf]
        %v482 = vld [vmem:[%s3 + $0xc] sm:$0xf]
        %v483 = vpack.c.bf16 %v476, %v476
        %v484 = vpack.c.bf16 %v477, %v477
        %v485 = vpack.c.bf16 %v478, %v478
        %v490 = vunpack.c.l.b16 %v479
        %v491 = vunpack.c.l.b16 %v480
        %v492 = vunpack.c.l.b16 %v481
        %v493 = vunpack.c.l.b16 %v482
        %v494 = vpack.c.b16 %v491, %v490
        %v495 = vpack.c.b16 %v493, %v492
        %vm496 = vcmask 31744
        %v498 = vsel %vm496, %v494, 0
        %v501 = vsel %vm496, %v495, 0
        %vm503 = vcmask 1041408
        %v505 = vsel %vm503, %v483, 0
        %v508 = vsel %vm503, %v484, 0
        %v511 = vsel %vm503, %v485, 0
        %513 = vmatprep.subr.bf16.mxu0 %v508
        %514 = vmatpush1.bf16.msra.mxu0 %v505
        %515 = vmatprep.subr.bf16.mxu0 0
        %516 = vmatpush1.bf16.msra.mxu0 0
        %517 = vmatprep.subr.bf16.mxu0 0
        %518 = vmatpush1.bf16.msra.mxu0 0
        %519 = vmatprep.subr.bf16.mxu0 0
        %520 = vmatpush1.bf16.msra.mxu0 0
        %521 = vmatprep.subr.bf16.mxu0 0
        %522 = vmatpush1.bf16.msra.mxu0 0
        %523 = vmatprep.subr.bf16.mxu0 0
        %524 = vmatpush1.bf16.msra.mxu0 0
        %525 = vmatprep.subr.bf16.mxu0 0
        %526 = vmatpush1.bf16.msra.mxu0 0
        %527 = vmatprep.subr.bf16.mxu0 0
        %528 = vmatpush1.bf16.msra.mxu0 0
        %529 = vmatprep.subr.bf16.mxu0 0
        %530 = vmatpush1.bf16.msra.mxu0 0
        %531 = vmatprep.subr.bf16.mxu0 0
        %532 = vmatpush1.bf16.msra.mxu0 0
        %533 = vmatprep.subr.bf16.mxu0 0
        %534 = vmatpush1.bf16.msra.mxu0 0
        %535 = vmatprep.subr.bf16.mxu0 0
        %536 = vmatpush1.bf16.msra.mxu0 0
        %537 = vmatprep.subr.bf16.mxu0 0
        %538 = vmatpush1.bf16.msra.mxu0 0
        %539 = vmatprep.subr.bf16.mxu0 0
        %540 = vmatpush1.bf16.msra.mxu0 0
        %541 = vmatprep.subr.bf16.mxu0 0
        %542 = vmatpush1.bf16.msra.mxu0 0
        %543 = vmatprep.subr.bf16.mxu0 0
        %544 = vmatpush1.bf16.msra.mxu0 0
        %545 = vmatprep.mubr.bf16.mxu0 0
        %546 = vmatmul.mubr.bf16.gmra.mrb[0].mxu0 %v498
        %v547 = vpop.f32.mrb[0].mxu0
        %v548 = vadd.f32 0.0, %v547
        %v549 = vpop.f32.mrb[0].mxu0
        %v550 = vadd.f32 0.0, %v549
        %v551 = vpop.f32.mrb[0].mxu0
        %v552 = vadd.f32 0.0, %v551
        %v553 = vpop.f32.mrb[0].mxu0
        %v554 = vadd.f32 0.0, %v553
        %555 = vmatprep.mubr.bf16.mxu0 0
        %556 = vmatmul.mubr.bf16.gmra.mrb[0].mxu0 %v501
        %v557 = vpop.f32.mrb[0].mxu0
        %v558 = vadd.f32 0.0, %v557
        %v559 = vpop.f32.mrb[0].mxu0
        %v560 = vadd.f32 0.0, %v559
        %v561 = vpop.f32.mrb[0].mxu0
        %v562 = vadd.f32 0.0, %v561
        %v563 = vpop.f32.mrb[0].mxu0
        %v564 = vadd.f32 0.0, %v563
        %565 = vdwg.mxu0
        %566 = vmatprep.subr.bf16.mxu0 0
        %567 = vmatpush1.bf16.msra.mxu0 %v511
        %568 = vmatprep.subr.bf16.mxu0 0
        %569 = vmatpush1.bf16.msra.mxu0 0
        %570 = vmatprep.subr.bf16.mxu0 0
        %571 = vmatpush1.bf16.msra.mxu0 0
        %572 = vmatprep.subr.bf16.mxu0 0
        %573 = vmatpush1.bf16.msra.mxu0 0
        %574 = vmatprep.subr.bf16.mxu0 0
        %575 = vmatpush1.bf16.msra.mxu0 0
        %576 = vmatprep.subr.bf16.mxu0 0
        %577 = vmatpush1.bf16.msra.mxu0 0
        %578 = vmatprep.subr.bf16.mxu0 0
        %579 = vmatpush1.bf16.msra.mxu0 0
        %580 = vmatprep.subr.bf16.mxu0 0
        %581 = vmatpush1.bf16.msra.mxu0 0
        %582 = vmatprep.subr.bf16.mxu0 0
        %583 = vmatpush1.bf16.msra.mxu0 0
        %584 = vmatprep.subr.bf16.mxu0 0
        %585 = vmatpush1.bf16.msra.mxu0 0
        %586 = vmatprep.subr.bf16.mxu0 0
        %587 = vmatpush1.bf16.msra.mxu0 0
        %588 = vmatprep.subr.bf16.mxu0 0
        %589 = vmatpush1.bf16.msra.mxu0 0
        %590 = vmatprep.subr.bf16.mxu0 0
        %591 = vmatpush1.bf16.msra.mxu0 0
        %592 = vmatprep.subr.bf16.mxu0 0
        %593 = vmatpush1.bf16.msra.mxu0 0
        %594 = vmatprep.subr.bf16.mxu0 0
        %595 = vmatpush1.bf16.msra.mxu0 0
        %596 = vmatprep.subr.bf16.mxu0 0
        %597 = vmatpush1.bf16.msra.mxu0 0
        %598 = vmatprep.mubr.bf16.mxu0 0
        %599 = vmatmul.mubr.bf16.gmra.mrb[0].mxu0 %v498
        %v600 = vpop.f32.mrb[0].mxu0
        %v601 = vadd.f32 0.0, %v600
        %v602 = vpop.f32.mrb[0].mxu0
        %v603 = vpop.f32.mrb[0].mxu0
        %v604 = vadd.f32 0.0, %v603
        %v605 = vpop.f32.mrb[0].mxu0
        %606 = vmatprep.mubr.bf16.mxu0 0
        %607 = vmatmul.mubr.bf16.gmra.mrb[0].mxu0 %v501
        %v608 = vpop.f32.mrb[0].mxu0
        %v609 = vadd.f32 0.0, %v608
        %v610 = vpop.f32.mrb[0].mxu0
        %v611 = vpop.f32.mrb[0].mxu0
        %v612 = vadd.f32 0.0, %v611
        %v613 = vpop.f32.mrb[0].mxu0
        %614 = vdwg.mxu0
        %v615 = vld [vmem:[%s7] sm:$0xff]
        %v616 = vld [vmem:[%s7 + $0x8] sm:$0xff]
        %v617 = vld [vmem:[%s7 + $0x10] sm:$0xff]
        %v618 = vld [vmem:[%s7 + $0x18] sm:$0xff]
        %620 = vset.pattern.permute.xlu0 0
        %621 = vperm.xlu0 %620, %v615
        %v622 = vpop.permute.xlu0 %621
        %625 = vset.pattern.permute.xlu0 0
        %626 = vperm.xlu0 %625, %v616
        %v627 = vpop.permute.xlu0 %626
        %630 = vset.pattern.permute.xlu0 0
        %631 = vperm.xlu0 %630, %v617
        %v632 = vpop.permute.xlu0 %631
        %635 = vset.pattern.permute.xlu0 0
        %636 = vperm.xlu0 %635, %v618
        %v637 = vpop.permute.xlu0 %636
        %v639 = vmul.f32 %v548, %v622
        %v640 = vmul.f32 %v550, %v622
        %v641 = vmul.f32 %v601, %v622
        %v642 = vmul.f32 %v552, %v627
        %v643 = vmul.f32 %v554, %v627
        %v644 = vmul.f32 %v604, %v627
        %v645 = vmul.f32 %v558, %v632
        %v646 = vmul.f32 %v560, %v632
        %v647 = vmul.f32 %v609, %v632
        %v648 = vmul.f32 %v562, %v637
        %v649 = vmul.f32 %v564, %v637
        %v650 = vmul.f32 %v612, %v637
        %v651 = vld [vmem:[%s8] sm:$0xff]
        %v652 = vld [vmem:[%s8 + $0x8] sm:$0xff]
        %v653 = vld [vmem:[%s8 + $0x10] sm:$0xff]
        %v654 = vld [vmem:[%s8 + $0x18] sm:$0xff]
        %656 = vset.pattern.permute.xlu0 0
        %657 = vperm.xlu0 %656, %v651
        %v658 = vpop.permute.xlu0 %657
        %661 = vset.pattern.permute.xlu0 0
        %662 = vperm.xlu0 %661, %v652
        %v663 = vpop.permute.xlu0 %662
        %666 = vset.pattern.permute.xlu0 0
        %667 = vperm.xlu0 %666, %v653
        %v668 = vpop.permute.xlu0 %667
        %671 = vset.pattern.permute.xlu0 0
        %672 = vperm.xlu0 %671, %v654
        %v673 = vpop.permute.xlu0 %672
        %v675 = vadd.f32 %v639, %v658
        %v676 = vadd.f32 %v640, %v658
        %v677 = vadd.f32 %v641, %v658
        %v678 = vadd.f32 %v642, %v663
        %v679 = vadd.f32 %v643, %v663
        %v680 = vadd.f32 %v644, %v663
        %v681 = vadd.f32 %v645, %v668
        %v682 = vadd.f32 %v646, %v668
        %v683 = vadd.f32 %v647, %v668
        %v684 = vadd.f32 %v648, %v673
        %v685 = vadd.f32 %v649, %v673
        %v686 = vadd.f32 %v650, %v673
        %v687 = vmax.f32 %v675, 0.0
        %v688 = vmax.f32 %v676, 0.0
        %v689 = vmax.f32 %v677, 0.0
        %v690 = vmax.f32 %v678, 0.0
        %v691 = vmax.f32 %v679, 0.0
        %v692 = vmax.f32 %v680, 0.0
        %v693 = vmax.f32 %v681, 0.0
        %v694 = vmax.f32 %v682, 0.0
        %v695 = vmax.f32 %v683, 0.0
        %v696 = vmax.f32 %v684, 0.0
        %v697 = vmax.f32 %v685, 0.0
        %v698 = vmax.f32 %v686, 0.0
        %s699 = smul.u32 %s28, 128
        %s700 = ssub.s32 %s699, 128
        %v701 = vlaneseq
        %v702 = vand.u32 %v701, 127
        %v703 = vadd.s32 %v702, 128
        %v704 = vadd.s32 %v702, 256
        %v705 = vstv %s700
        %v706 = vadd.s32 %v705, %v702
        %v707 = vadd.s32 %v705, %v703
        %v708 = vadd.s32 %v705, %v704
        %vm709 = vcmp.ge.s32.totalorder %v706, 0
        %vm710 = vcmp.ge.s32.totalorder %v707, 0
        %vm711 = vcmp.ge.s32.totalorder %v708, 0
        %vm712 = vcmp.lt.s32.totalorder %v706, 16
        %vm713 = vcmp.lt.s32.totalorder %v707, 16
        %vm714 = vcmp.lt.s32.totalorder %v708, 16
        %vm715 = vmand %vm709, %vm712
        %vm716 = vmand %vm710, %vm713
        %vm717 = vmand %vm711, %vm714
        %v718 = vsel %vm715, %v687, 0.0
        %v719 = vsel %vm716, %v688, 0.0
        %v720 = vsel %vm717, %v689, 0.0
        %v721 = vsel %vm715, %v690, 0.0
        %v722 = vsel %vm716, %v691, 0.0
        %v723 = vsel %vm717, %v692, 0.0
        %v724 = vsel %vm715, %v693, 0.0
        %v725 = vsel %vm716, %v694, 0.0
        %v726 = vsel %vm717, %v695, 0.0
        %v727 = vsel %vm715, %v696, 0.0
        %v728 = vsel %vm716, %v697, 0.0
        %v729 = vsel %vm717, %v698, 0.0
        %730 = vrot.lane.b32.xlu0 %v718, 1
        %v731 = vpop.permute.xlu0 %730
        %732 = vrot.lane.b32.xlu0 %v721, 1
        %v733 = vpop.permute.xlu0 %732
        %734 = vrot.lane.b32.xlu0 %v724, 1
        %v735 = vpop.permute.xlu0 %734
        %736 = vrot.lane.b32.xlu0 %v727, 1
        %v737 = vpop.permute.xlu0 %736
        %738 = vrot.lane.b32.xlu0 %v719, 1
        %v739 = vpop.permute.xlu0 %738
        %740 = vrot.lane.b32.xlu0 %v722, 1
        %v741 = vpop.permute.xlu0 %740
        %742 = vrot.lane.b32.xlu0 %v725, 1
        %v743 = vpop.permute.xlu0 %742
        %744 = vrot.lane.b32.xlu0 %v728, 1
        %v745 = vpop.permute.xlu0 %744
        %vm746 = vcmp.lt.s32.totalorder %v702, 1
        %v747 = vsel %vm746, %v731, %v739
        %v748 = vsel %vm746, %v733, %v741
        %v749 = vsel %vm746, %v735, %v743
        %v750 = vsel %vm746, %v737, %v745
        %751 = vrot.lane.b32.xlu0 %v719, 127
        %v752 = vpop.permute.xlu0 %751
        %753 = vrot.lane.b32.xlu0 %v722, 127
        %v754 = vpop.permute.xlu0 %753
        %755 = vrot.lane.b32.xlu0 %v725, 127
        %v756 = vpop.permute.xlu0 %755
        %757 = vrot.lane.b32.xlu0 %v728, 127
        %v758 = vpop.permute.xlu0 %757
        %759 = vrot.lane.b32.xlu0 %v720, 127
        %v760 = vpop.permute.xlu0 %759
        %761 = vrot.lane.b32.xlu0 %v723, 127
        %v762 = vpop.permute.xlu0 %761
        %763 = vrot.lane.b32.xlu0 %v726, 127
        %v764 = vpop.permute.xlu0 %763
        %765 = vrot.lane.b32.xlu0 %v729, 127
        %v766 = vpop.permute.xlu0 %765
        %vm767 = vcmp.lt.s32.totalorder %v702, 127
        %v768 = vsel %vm767, %v752, %v760
        %v769 = vsel %vm767, %v754, %v762
        %v770 = vsel %vm767, %v756, %v764
        %v771 = vsel %vm767, %v758, %v766
        %v772 = vpack.c.bf16 %v748, %v747
        %v773 = vpack.c.bf16 %v750, %v749
        %v774 = vpack.c.bf16 %v722, %v719
        %v775 = vpack.c.bf16 %v728, %v725
        %v776 = vpack.c.bf16 %v769, %v768
        %v777 = vpack.c.bf16 %v771, %v770
        %v778 = vld [vmem:[%s6] sm:$0xf]
        %vm779 = vcmask 785408
        %v781 = vsel %vm779, %v778, 0
        %783 = vmatprep.subr.bf16.mxu0 0
        %784 = vmatpush1.bf16.msra.mxu0 %v772
        %785 = vmatprep.subr.bf16.mxu0 0
        %786 = vmatpush1.bf16.msra.mxu0 %v773
        %787 = vmatprep.subr.bf16.mxu0 0
        %788 = vmatpush1.bf16.msra.mxu0 %v774
        %789 = vmatprep.subr.bf16.mxu0 0
        %790 = vmatpush1.bf16.msra.mxu0 %v775
        %791 = vmatprep.subr.bf16.mxu0 0
        %792 = vmatpush1.bf16.msra.mxu0 %v776
        %793 = vmatprep.subr.bf16.mxu0 0
        %794 = vmatpush1.bf16.msra.mxu0 %v777
        %795 = vmatprep.subr.bf16.mxu0 0
        %796 = vmatpush1.bf16.msra.mxu0 0
        %797 = vmatprep.subr.bf16.mxu0 0
        %798 = vmatpush1.bf16.msra.mxu0 0
        %799 = vmatprep.subr.bf16.mxu0 0
        %800 = vmatpush1.bf16.msra.mxu0 0
        %801 = vmatprep.subr.bf16.mxu0 0
        %802 = vmatpush1.bf16.msra.mxu0 0
        %803 = vmatprep.subr.bf16.mxu0 0
        %804 = vmatpush1.bf16.msra.mxu0 0
        %805 = vmatprep.subr.bf16.mxu0 0
        %806 = vmatpush1.bf16.msra.mxu0 0
        %807 = vmatprep.subr.bf16.mxu0 0
        %808 = vmatpush1.bf16.msra.mxu0 0
        %809 = vmatprep.subr.bf16.mxu0 0
        %810 = vmatpush1.bf16.msra.mxu0 0
        %811 = vmatprep.subr.bf16.mxu0 0
        %812 = vmatpush1.bf16.msra.mxu0 0
        %813 = vmatprep.subr.bf16.mxu0 0
        %814 = vmatpush1.bf16.msra.mxu0 0
        %815 = vmatprep.mubr.bf16.mxu0 0
        %816 = vmatmul.mubr.bf16.gmra.mrb[0].mxu0 %v781
        %v817 = vpop.f32.mrb[0].mxu0
        %v818 = vadd.f32 0.0, %v817
        %v819 = vpop.f32.mrb[0].mxu0
        %v820 = vpop.f32.mrb[0].mxu0
        %v821 = vpop.f32.mrb[0].mxu0
        %822 = vdwg.mxu0
        %823 = vst [vmem:[%s417] sm:$0xff] %v818
        %s824 = sand.u32 %s267, 1
        %s825 = scalar_lea.sflag [#allocation3], %s824
        %s826 = sand.u32 %s267, 1
        %s827 = smul.addr %s826, 8
        %s828 = scalar_lea.vmem [#allocation2], %s827
        // Predicated region
        $region57: #{tpu_custom_call.1} parent=55 // pred_check
          %p829 = pneg %p277
        $region58: #{tpu_custom_call.1} parent=55 // pred_check_branch
          %831 = sbr.rel (%p829) target = $region60
        $region59: #{tpu_custom_call.1} parent=55 // pred_region
          %s833 = ssub.s32 128, 128
          %834 = vsyncadd %s825, %s833
          %s835 = sadd.s32 %s28, %s27
          %s836 = smul.addr %s835, 128
          %s837 = scalar_lea.hbm %s9, %s836
          %s839 = sshll.u32 %s828, 4
          %s840 = int_to_ptr.vmem [resolvable:$true] %s839
          %842 = dma.vmem_to_hbm [thread:$0]  %s840, 128, %s837, %s825
        $region60: #{tpu_custom_call.1} parent=55 // pred_fallthru
          _
      $region56: #{tpu_custom_call.1} parent=5 // pred_fallthru
        _
      %p843 = scmp.le.s32.totalorder 2, %s18
      // Predicated region
      $region61: #{tpu_custom_call.1} parent=5 // pred_check
        %p844 = pneg %p843
      $region62: #{tpu_custom_call.1} parent=5 // pred_check_branch
        %846 = sbr.rel (%p844) target = $region64
      $region63: #{tpu_custom_call.1} parent=5 // pred_region
        %s847 = ssub.s32 %s18, 2
        // Predicated region
        $region65: #{tpu_custom_call.1} parent=63 // pred_check
          %p848 = pneg %p283
        $region66: #{tpu_custom_call.1} parent=63 // pred_check_branch
          %850 = sbr.rel (%p848) target = $region68
        $region67: #{tpu_custom_call.1} parent=63 // pred_region
          %s851 = sand.u32 %s268, 1
          %s852 = scalar_lea.sflag [#allocation3], %s851
          %s853 = sand.u32 %s268, 1
          %s854 = smul.addr %s853, 8
          %s855 = scalar_lea.vmem [#allocation2], %s854
          %856 = dma.done %s852, 128
        $region68: #{tpu_custom_call.1} parent=63 // pred_fallthru
          _
      $region64: #{tpu_custom_call.1} parent=5 // pred_fallthru
        _
    $region6: #{tpu_custom_call.1} parent=1 // loop_footer
      %s22 = sadd.s32 1, %s18
    $region7: #{tpu_custom_call.1} parent=1 // loop_footer_branch
      %17 = sbr.rel target = $region3
    $region8: #{tpu_custom_call.1} parent=1 // loop_exit
      _
    %857 = vsyncpa [#allocation3], 1
    %s858 = scalar_lea.sflag [#allocation3], 1
    %859 = vsyncpa %s858, 1

</llo_original>
